<compile_context>
chip_gen: v6e
topology: v6e:2x2x1
jax: 0.10.0
libtpu: 0.0.40
codegen_flags: <defaults>
</compile_context>

<pallas_src>
import functools

import jax
import jax.numpy as jnp
from jax.experimental import pallas as pl
from jax.experimental.pallas import tpu as pltpu

LAYER_NORM_EPS = 1e-5


def _round_up(x, m):
    return ((x + m - 1) // m) * m


def _vmem_capacity_bytes():
    # Trace-time hardware query; fall back to the most conservative (v7x) size.
    try:
        return int(pltpu.get_tpu_info().vmem_capacity_bytes)
    except Exception:
        return 64 * 1024 * 1024


def _pick_row_tile(rows, d_pad, itemsize, vmem_cap):
    """Largest sublane-packed row tile fitting ~1/4 of physical VMEM."""
    pack = 32 // itemsize  # 8 rows for f32, 16 for bf16, 32 for int8/fp8
    budget = vmem_cap // 4
    # Per-row VMEM cost: double-buffered in+out blocks in source dtype plus
    # ~6x f32 intermediates (x, centered, squares, normalized, ...).
    per_row = d_pad * (4 * itemsize + 6 * 4)
    tile = budget // max(per_row, 1)
    tile = max(pack, min(int(tile), 1024))
    tile = (tile // pack) * pack
    # Don't tile far beyond the actual number of rows (avoids useless padding).
    tile = min(tile, _round_up(rows, pack))
    return max(pack, tile)


def _vmem_limit_bytes(row_tile, d_pad, itemsize, vmem_cap):
    io_block = row_tile * d_pad * itemsize
    f32_block = row_tile * d_pad * 4
    need = 2 * 2 * io_block + 6 * f32_block + 4 * d_pad * 4 + (2 << 20)
    need = max(need, 32 * 1024 * 1024)
    return int(min(need, int(vmem_cap * 0.85)))


def _layernorm_kernel(x_ref, w_ref, b_ref, o_ref, *, eps, d_valid):
    # x_ref: (row_tile, d_pad) in VMEM; last d_pad - d_valid lanes are padding.
    x = x_ref[...].astype(jnp.float32)
    d_pad = x.shape[-1]

    if d_valid != d_pad:
        lane = jax.lax.broadcasted_iota(jnp.int32, x.shape, dimension=1)
        mask = (lane < d_valid).astype(jnp.float32)
        x = x * mask  # padded lanes contribute nothing to the statistics

    inv_d = jnp.float32(1.0 / d_valid)
    mean = jnp.sum(x, axis=-1, keepdims=True) * inv_d
    centered = x - mean
    if d_valid != d_pad:
        centered = centered * mask
    var = jnp.sum(centered * centered, axis=-1, keepdims=True) * inv_d
    scale = jax.lax.rsqrt(var + eps)  # EUP rsqrt; eps inside, matches reference

    w = w_ref[...].astype(jnp.float32)  # (1, d_pad), broadcasts over rows
    b = b_ref[...].astype(jnp.float32)
    o_ref[...] = (centered * scale * w + b).astype(o_ref.dtype)


def layer_norm(residual, w, b, *, eps=LAYER_NORM_EPS, row_tile=None):
    """residual: [batch, position, d_model]; w, b: [d_model]."""
    batch, pos, d_model = residual.shape
    rows = batch * pos
    itemsize = jnp.dtype(residual.dtype).itemsize
    vmem_cap = _vmem_capacity_bytes()

    # Lane-dense last dim: pad d_model up to a multiple of 128.
    d_pad = _round_up(max(d_model, 128), 128)

    if row_tile is None:
        row_tile = _pick_row_tile(rows, d_pad, itemsize, vmem_cap)
    rows_pad = _round_up(rows, row_tile)

    x2d = residual.reshape(rows, d_model)
    if rows_pad != rows or d_pad != d_model:
        x2d = jnp.pad(x2d, ((0, rows_pad - rows), (0, d_pad - d_model)))
    if d_pad != d_model:
        w2d = jnp.pad(w, (0, d_pad - d_model)).reshape(1, d_pad)
        b2d = jnp.pad(b, (0, d_pad - d_model)).reshape(1, d_pad)
    else:
        w2d = w.reshape(1, d_pad)
        b2d = b.reshape(1, d_pad)

    out2d = pl.pallas_call(
        functools.partial(_layernorm_kernel, eps=eps, d_valid=d_model),
        out_shape=jax.ShapeDtypeStruct((rows_pad, d_pad), residual.dtype),
        grid_spec=pltpu.PrefetchScalarGridSpec(
            num_scalar_prefetch=0,
            grid=(rows_pad // row_tile,),
            in_specs=[
                pl.BlockSpec((row_tile, d_pad), lambda i: (i, 0)),
                pl.BlockSpec((1, d_pad), lambda i: (0, 0)),
                pl.BlockSpec((1, d_pad), lambda i: (0, 0)),
            ],
            out_specs=pl.BlockSpec((row_tile, d_pad), lambda i: (i, 0)),
        ),
        compiler_params=pltpu.CompilerParams(
            dimension_semantics=("parallel",),
            vmem_limit_bytes=_vmem_limit_bytes(row_tile, d_pad, itemsize,
                                               vmem_cap),
        ),
    )(x2d, w2d, b2d)

    out2d = out2d[:rows, :d_model]
    return out2d.reshape(batch, pos, d_model)


def layer_norm_ref(residual, w, b, *, eps=LAYER_NORM_EPS):
    # Pure-JAX reference mirroring the PyTorch forward.
    mean = jnp.mean(residual, axis=-1, keepdims=True)
    centered = residual - mean
    scale = jnp.sqrt(jnp.mean(centered ** 2, axis=-1, keepdims=True) + eps)
    normalized = centered / scale
    return normalized * w + b


if __name__ == "__main__":
    # TODO(synk): the cfg.debug shape prints in the PyTorch forward are host-side
    # logging and are intentionally omitted from the kernel.
    key = jax.random.PRNGKey(0)

    # Primary small test consistent with the module: batch=2, position=8,
    # d_model=32 (exercises the lane-padding path, since 32 < 128).
    batch, pos, d_model = 2, 8, 32
    k0, k1 = jax.random.split(key)
    residual = jax.random.normal(k0, (batch, pos, d_model), dtype=jnp.float32)
    w = jnp.ones((d_model,), dtype=jnp.float32)
    b = jnp.zeros((d_model,), dtype=jnp.float32)

    out = jax.block_until_ready(layer_norm(residual, w, b))
    ref = layer_norm_ref(residual, w, b)
    assert out.shape == (batch, pos, d_model)
    assert jnp.allclose(out, ref, atol=1e-5, rtol=1e-5), "mismatch (d_model=32)"

    # Secondary check: lane-dense d_model=128, ragged row count (exercises the
    # row-padding / tail handling path) and non-trivial gamma/beta.
    b2, p2, d2 = 1, 9, 128
    k2, k3, k4 = jax.random.split(k1, 3)
    res2 = jax.random.normal(k2, (b2, p2, d2), dtype=jnp.float32)
    w2 = 1.0 + 0.1 * jax.random.normal(k3, (d2,), dtype=jnp.float32)
    bb2 = 0.1 * jax.random.normal(k4, (d2,), dtype=jnp.float32)

    out2 = jax.block_until_ready(layer_norm(res2, w2, bb2))
    ref2 = layer_norm_ref(res2, w2, bb2)
    assert out2.shape == (b2, p2, d2)
    assert jnp.allclose(out2, ref2, atol=1e-5, rtol=1e-5), "mismatch (d_model=128)"

    print("KERNEL_OK")
</pallas_src>

<mosaic_0001>
module attributes {stable_mosaic.version = 11 : i64} {
  func.func @_layernorm_kernel(%arg0: i32, %arg1: memref<16x128xf32, #tpu.memory_space<vmem>>, %arg2: memref<1x128xf32, #tpu.memory_space<vmem>>, %arg3: memref<1x128xf32, #tpu.memory_space<vmem>>, %arg4: memref<16x128xf32, #tpu.memory_space<vmem>>) attributes {dimension_semantics = [#tpu.dimension_semantics<parallel>], iteration_bounds = array<i64: 1>, scalar_prefetch = 0 : i64, scratch_operands = 0 : i64, tpu.core_type = #tpu.core_type<tc>, window_params = [{transform_indices = @transform_0, window_bounds = array<i64: 16, 128>}, {pipeline_mode = #tpu.pipeline_mode<synchronous>, transform_indices = @transform_1, window_bounds = array<i64: 1, 128>}, {pipeline_mode = #tpu.pipeline_mode<synchronous>, transform_indices = @transform_2, window_bounds = array<i64: 1, 128>}, {transform_indices = @transform_3, window_bounds = array<i64: 16, 128>}]} {
    %c0 = arith.constant 0 : index
    %c0_0 = arith.constant 0 : index
    %0 = vector.load %arg1[%c0, %c0_0] : memref<16x128xf32, #tpu.memory_space<vmem>>, vector<16x128xf32>
    %1 = tpu.iota {dimensions = array<i32: 1>} : vector<16x128xi32>
    %c32_i32 = arith.constant 32 : i32
    %2 = vector.broadcast %c32_i32 : i32 to vector<16x128xi32>
    %3 = arith.cmpi slt, %1, %2 : vector<16x128xi32>
    %4 = arith.extui %3 : vector<16x128xi1> to vector<16x128xi32>
    %5 = arith.sitofp %4 : vector<16x128xi32> to vector<16x128xf32>
    %6 = arith.mulf %0, %5 : vector<16x128xf32>
    %cst = arith.constant dense<0.000000e+00> : vector<16xf32>
    %7 = vector.multi_reduction <add>, %6, %cst [1] : vector<16x128xf32> to vector<16xf32>
    %8 = vector.shape_cast %7 : vector<16xf32> to vector<16x1xf32>
    %cst_1 = arith.constant 3.125000e-02 : f32
    %9 = vector.broadcast %cst_1 : f32 to vector<16x1xf32>
    %10 = arith.mulf %8, %9 : vector<16x1xf32>
    %11 = vector.broadcast %10 : vector<16x1xf32> to vector<16x128xf32>
    %12 = arith.subf %6, %11 : vector<16x128xf32>
    %13 = arith.mulf %12, %5 : vector<16x128xf32>
    %14 = arith.mulf %13, %13 : vector<16x128xf32>
    %cst_2 = arith.constant dense<0.000000e+00> : vector<16xf32>
    %15 = vector.multi_reduction <add>, %14, %cst_2 [1] : vector<16x128xf32> to vector<16xf32>
    %16 = vector.shape_cast %15 : vector<16xf32> to vector<16x1xf32>
    %cst_3 = arith.constant 3.125000e-02 : f32
    %17 = vector.broadcast %cst_3 : f32 to vector<16x1xf32>
    %18 = arith.mulf %16, %17 : vector<16x1xf32>
    %cst_4 = arith.constant 9.99999974E-6 : f32
    %19 = vector.broadcast %cst_4 : f32 to vector<16x1xf32>
    %20 = arith.addf %18, %19 : vector<16x1xf32>
    %21 = math.rsqrt %20 : vector<16x1xf32>
    %c0_5 = arith.constant 0 : index
    %c0_6 = arith.constant 0 : index
    %22 = vector.load %arg2[%c0_5, %c0_6] : memref<1x128xf32, #tpu.memory_space<vmem>>, vector<1x128xf32>
    %c0_7 = arith.constant 0 : index
    %c0_8 = arith.constant 0 : index
    %23 = vector.load %arg3[%c0_7, %c0_8] : memref<1x128xf32, #tpu.memory_space<vmem>>, vector<1x128xf32>
    %24 = vector.broadcast %21 : vector<16x1xf32> to vector<16x128xf32>
    %25 = arith.mulf %13, %24 : vector<16x128xf32>
    %26 = vector.broadcast %22 : vector<1x128xf32> to vector<16x128xf32>
    %27 = arith.mulf %25, %26 : vector<16x128xf32>
    %28 = vector.broadcast %23 : vector<1x128xf32> to vector<16x128xf32>
    %29 = arith.addf %27, %28 : vector<16x128xf32>
    %c0_9 = arith.constant 0 : index
    %c0_10 = arith.constant 0 : index
    %30 = vector.load %arg4[%c0_9, %c0_10] : memref<16x128xf32, #tpu.memory_space<vmem>>, vector<16x128xf32>
    tpu.vector_store %arg4[%c0_9, %c0_10], %29 {strides = array<i32>} : memref<16x128xf32, #tpu.memory_space<vmem>>, vector<16x128xf32>,
    return
  }
  func.func @transform_0(%arg0: i32) -> (i32, i32) {
    %c0_i32 = arith.constant 0 : i32
    %c0_i32_0 = arith.constant 0 : i32
    return %arg0, %c0_i32 : i32, i32
  }
  func.func @transform_1(%arg0: i32) -> (i32, i32) {
    %c0_i32 = arith.constant 0 : i32
    %c0_i32_0 = arith.constant 0 : i32
    %c0_i32_1 = arith.constant 0 : i32
    return %c0_i32, %c0_i32_0 : i32, i32
  }
  func.func @transform_2(%arg0: i32) -> (i32, i32) {
    %c0_i32 = arith.constant 0 : i32
    %c0_i32_0 = arith.constant 0 : i32
    %c0_i32_1 = arith.constant 0 : i32
    return %c0_i32, %c0_i32_0 : i32, i32
  }
  func.func @transform_3(%arg0: i32) -> (i32, i32) {
    %c0_i32 = arith.constant 0 : i32
    %c0_i32_0 = arith.constant 0 : i32
    return %arg0, %c0_i32 : i32, i32
  }
}

</mosaic_0001>

<llo_original>
// kernel: tpu_custom_call.1
$region0: #{tpu_custom_call.1}
  #allocation0 [shape = 'u32[]', space=smem, size = 0x4, offset = 0x4, fixed_abs, tag = 'smem constant byte address 0x4 - core index']
  #allocation1 [shape = 'u32[144,128]{1,0:T(1,128)}', space=vmem, size = 0x12000, scoped, tag = 'internal scratch']
  %s0 = inlined_call_operand.hbm [shape: f32[16,128], index: 0, kind: input, shape index: {}]
  %s1 = inlined_call_operand.vmem [shape: f32[1,128], index: 1, kind: input, shape index: {}]
  %s2 = inlined_call_operand.vmem [shape: f32[1,128], index: 2, kind: input, shape index: {}]
  %s3 = inlined_call_operand.hbm [shape: f32[16,128], index: 3, kind: output, shape index: {}]
  %s4 = sld [smem:[#allocation0]]
  $region26: #{tpu_custom_call.1} parent=0
    _
  %s6 = ssub.s32 1, %s4
  %s7 = scalar_select 0, %s6, %s4
  $region1: #{tpu_custom_call.1} parent=0
    #allocation2 [shape = 'u8[8192]{0}', space=vmem, size = 0x2000, scoped, tag = 'input window, operand 0, single buffered']
    #allocation3 [shape = 's32[1]{0}', space=sflag, size = 0x4, scoped, tag = 'scoped memory for tpu_custom_call.1']
    #allocation4 [shape = 's32[1]{0}', space=sflag, size = 0x4, scoped, tag = 'scoped memory for tpu_custom_call.1']
    #allocation5 [shape = 'u8[8192]{0}', space=vmem, size = 0x2000, scoped, tag = 'output window, operand 0, single buffered']
    %8 = vsyncpa [#allocation3], 0
    %9 = vsyncpa [#allocation4], 0
    // Predicated region
    $region2: #{tpu_custom_call.1} parent=1 // pred_check
      _
    $region3: #{tpu_custom_call.1} parent=1 // pred_check_branch
      %11 = sbr.rel (0) target = $region5
    $region4: #{tpu_custom_call.1} parent=1 // pred_region
      %s13 = ssub.s32 256, 256
      %14 = vsyncadd [#allocation3], %s13
      %s15 = sshll.u32 [#allocation2], 4
      %s16 = int_to_ptr.vmem [resolvable:$true] %s15
      %21 = dma.hbm_to_vmem [thread:$0]  %s0, 256, %s16, [#allocation3], 128, 128, 8
    $region5: #{tpu_custom_call.1} parent=1 // pred_fallthru
      _
    // Predicated region
    $region6: #{tpu_custom_call.1} parent=1 // pred_check
      _
    $region7: #{tpu_custom_call.1} parent=1 // pred_check_branch
      %23 = sbr.rel (0) target = $region9
    $region8: #{tpu_custom_call.1} parent=1 // pred_region
      _
    $region9: #{tpu_custom_call.1} parent=1 // pred_fallthru
      _
    // Predicated region
    $region10: #{tpu_custom_call.1} parent=1 // pred_check
      _
    $region11: #{tpu_custom_call.1} parent=1 // pred_check_branch
      %25 = sbr.rel (0) target = $region13
    $region12: #{tpu_custom_call.1} parent=1 // pred_region
      _
    $region13: #{tpu_custom_call.1} parent=1 // pred_fallthru
      _
    // Predicated region
    $region14: #{tpu_custom_call.1} parent=1 // pred_check
      _
    $region15: #{tpu_custom_call.1} parent=1 // pred_check_branch
      %27 = sbr.rel (0) target = $region17
    $region16: #{tpu_custom_call.1} parent=1 // pred_region
      %28 = dma.done [#allocation3], 256
    $region17: #{tpu_custom_call.1} parent=1 // pred_fallthru
      _
    %v29 = vld [vmem:[#allocation2] sm:$0xff]
    %v30 = vld [vmem:[#allocation2 + $0x8] sm:$0xff]
    %v31 = vlaneseq
    %v32 = vand.u32 %v31, 127
    %vm33 = vcmp.lt.s32.totalorder %v32, 32
    %v34 = vsel %vm33, 1, 0
    %v35 = vcvt.s32.f32 %v34
    %v36 = vmul.f32 %v29, %v35
    %v37 = vmul.f32 %v30, %v35
    %38 = vadd.xlane.f32.xlu0 %v36
    %v39 = vpop.xlane.xlu0 %38
    %40 = vadd.xlane.f32.xlu0 %v37
    %v41 = vpop.xlane.xlu0 %40
    %v42 = vmul.f32 %v39, 0.03125
    %v43 = vmul.f32 %v41, 0.03125
    %v44 = vsub.f32 %v36, %v42
    %v45 = vsub.f32 %v37, %v43
    %v46 = vmul.f32 %v44, %v35
    %v47 = vmul.f32 %v45, %v35
    %v48 = vmul.f32 %v46, %v46
    %v49 = vmul.f32 %v47, %v47
    %50 = vadd.xlane.f32.xlu0 %v48
    %v51 = vpop.xlane.xlu0 %50
    %52 = vadd.xlane.f32.xlu0 %v49
    %v53 = vpop.xlane.xlu0 %52
    %v54 = vmul.f32 %v51, 0.03125
    %v55 = vmul.f32 %v53, 0.03125
    %v56 = vadd.f32 %v54, 1e-05
    %v57 = vadd.f32 %v55, 1e-05
    %v58 = vrsqrt.pop %v56
    %v59 = vrsqrt.pop %v57
    %v60 = vld [vmem:[%s1] sm:$0x1]
    %v61 = vld [vmem:[%s2] sm:$0x1]
    %v62 = vmul.f32 %v46, %v58
    %v63 = vmul.f32 %v47, %v59
    %v65 = vlaneseq
    %v66 = vshrl.u32 %v65, 7
    %v67 = vsub.s32 0, %v66
    %v68 = vrot.slane %v60, %v67
    %v70 = vmul.f32 %v62, %v68
    %v71 = vmul.f32 %v63, %v68
    %v73 = vlaneseq
    %v74 = vshrl.u32 %v73, 7
    %v75 = vsub.s32 0, %v74
    %v76 = vrot.slane %v61, %v75
    %v78 = vadd.f32 %v70, %v76
    %v79 = vadd.f32 %v71, %v76
    %80 = vst [vmem:[#allocation5] sm:$0xff] %v78
    %81 = vst [vmem:[#allocation5 + $0x8] sm:$0xff] %v79
    // Predicated region
    $region18: #{tpu_custom_call.1} parent=1 // pred_check
      _
    $region19: #{tpu_custom_call.1} parent=1 // pred_check_branch
      %83 = sbr.rel (0) target = $region21
    $region20: #{tpu_custom_call.1} parent=1 // pred_region
      %s85 = ssub.s32 256, 256
      %86 = vsyncadd [#allocation4], %s85
      %s87 = sshll.u32 [#allocation5], 4
      %s88 = int_to_ptr.vmem [resolvable:$true] %s87
      %93 = dma.vmem_to_hbm [thread:$0]  %s88, 256, %s3, [#allocation4], 128, 128, 8
    $region21: #{tpu_custom_call.1} parent=1 // pred_fallthru
      _
    // Predicated region
    $region22: #{tpu_custom_call.1} parent=1 // pred_check
      _
    $region23: #{tpu_custom_call.1} parent=1 // pred_check_branch
      %95 = sbr.rel (0) target = $region25
    $region24: #{tpu_custom_call.1} parent=1 // pred_region
      %96 = dma.done [#allocation4], 256
    $region25: #{tpu_custom_call.1} parent=1 // pred_fallthru
      _
    %97 = vsyncpa [#allocation3], 1
    %98 = vsyncpa [#allocation4], 1

</llo_original>
